<compile_context>
chip_gen: v6e
topology: v6e:2x2x1
jax: 0.10.0
libtpu: 0.0.40
codegen_flags: <defaults>
</compile_context>

<pallas_src>
import jax
import jax.numpy as jnp
from jax.experimental import pallas as pl
from jax.experimental.pallas import tpu as pltpu


_NEG_BIG = -1e30  # bias for padded classes: exp(pad - max) == 0 exactly in f32


def _round_up(x, m):
    return (x + m - 1) // m * m


def readout_kernel(x_ref, w_ref, b_ref, o_ref):
    # Linear: logits = x @ W_t + b. Weight is already [D_in, D_out_p] (padded,
    # pre-transposed once in the wrapper) -> plain MXU contraction, f32 acc.
    logits = jnp.dot(x_ref[...], w_ref[...], preferred_element_type=jnp.float32)
    logits = logits + b_ref[...]

    # Numerically stable softmax over the class axis (PyTorch dim=1 for 2-D x).
    m = jnp.max(logits, axis=-1, keepdims=True)
    e = jnp.exp(logits - m)
    denom = jnp.sum(e, axis=-1, keepdims=True)
    # EUP approx reciprocal (co-issues for free) + one Newton step -> f32-exact.
    r = pl.reciprocal(denom, approx=True)
    r = r * (2.0 - denom * r)
    o_ref[...] = (e * r).astype(o_ref.dtype)


def readout_head(x, weight, bias):
    """Linear -> softmax(dim=1).

    x: [B, D_in], weight: [D_out, D_in] (PyTorch layout), bias: [D_out].
    """
    B, D_in = x.shape
    D_out = weight.shape[0]
    out_dtype = x.dtype
    in_esz = jnp.dtype(x.dtype).itemsize
    out_esz = jnp.dtype(out_dtype).itemsize

    # ---- Class-axis padding: lane-dense output. Heads wider than 128 are
    # padded to a multiple of 256 so v6e/v7x's 256-wide MXU is fully used
    # (padded classes get zero weights and a -1e30 bias -> exactly 0 prob,
    # sliced off below; on v5e the extra columns only add trivial VPU work).
    lane_align = 128 if D_out <= 128 else 256
    D_out_p = _round_up(D_out, lane_align)
    if D_out_p != D_out:
        weight = jnp.pad(weight, ((0, D_out_p - D_out), (0, 0)))
        bias = jnp.pad(bias, (0, D_out_p - D_out), constant_values=_NEG_BIG)

    # Pre-transpose ONCE outside the grid (single XLA transpose); the kernel
    # then does a plain [TB, D_in] @ [D_in, D_out_p] contraction with no
    # per-grid-step transpose work on the resident weight.
    w_t = weight.T  # [D_in, D_out_p]
    b2d = bias.reshape(1, D_out_p).astype(jnp.float32)

    # ---- VMEM budget from the actual chip, communicated to the compiler.
    try:
        vmem_cap = int(pltpu.get_tpu_info().vmem_capacity_bytes)
    except Exception:
        vmem_cap = 64 << 20  # conservative fallback (v7x per-TC size)
    vmem_budget = (vmem_cap * 3) // 4  # ~96 MiB on v5e/v6e, ~48 MiB on v7x

    # Resident (single-buffered): weight + f32 bias row.
    resident = D_in * D_out_p * in_esz + D_out_p * 4
    if resident > vmem_budget:
        # TODO(synk): vocab-scale D_out*D_in needs a second 'arbitrary' grid
        # axis over D_out with an online softmax; not implemented here.
        raise NotImplementedError(
            f"resident weight ({resident} B) exceeds VMEM budget "
            f"({vmem_budget} B); add a D_out-split online-softmax path.")

    # Per batch-row footprint: double-buffered x / out tiles plus the f32
    # logits + exp intermediates (present regardless of the input dtype).
    per_row = 2 * D_in * in_esz + 2 * D_out_p * out_esz + 3 * D_out_p * 4
    avail = max(vmem_budget - resident, 8 * per_row)
    TB = max(8, min(1024, (avail // per_row) // 8 * 8))

    # Pad the batch only to a sublane multiple; last grid block may be ragged.
    B_p = _round_up(B, 8)
    TB = min(TB, B_p)
    # Keep >=2 grid steps when the batch allows it, so v7x's two TensorCores
    # both get work on the "parallel" batch axis.
    if B_p > 8:
        TB = min(TB, max(8, _round_up(B_p // 2, 8)))
    if B_p != B:
        x = jnp.pad(x, ((0, B_p - B), (0, 0)))

    grid = (pl.cdiv(B_p, TB),)

    # TODO(synk): if xprof shows exposed input DMA for tiny D_in, sweep
    # pipeline_mode=pl.Buffered(3) on the x spec.
    out = pl.pallas_call(
        readout_kernel,
        out_shape=jax.ShapeDtypeStruct((B_p, D_out_p), out_dtype),
        grid_spec=pltpu.PrefetchScalarGridSpec(
            num_scalar_prefetch=0,
            grid=grid,
            in_specs=[
                # x tile: streamed, double-buffered (default).
                pl.BlockSpec((TB, D_in), lambda i: (i, 0)),
                # weight: resident across the grid -> single buffer.
                pl.BlockSpec((D_in, D_out_p), lambda i: (0, 0),
                             pipeline_mode=pl.Buffered(1)),
                # bias: resident -> single buffer.
                pl.BlockSpec((1, D_out_p), lambda i: (0, 0),
                             pipeline_mode=pl.Buffered(1)),
            ],
            out_specs=pl.BlockSpec((TB, D_out_p), lambda i: (i, 0)),
        ),
        compiler_params=pltpu.CompilerParams(
            dimension_semantics=("parallel",),
            vmem_limit_bytes=vmem_budget,
        ),
    )(x, w_t, b2d)

    return out[:B, :D_out]


if __name__ == "__main__":
    key = jax.random.PRNGKey(0)
    k_x, k_w, k_b = jax.random.split(key, 3)

    B, D_in, D_out = 8, 32, 16

    # Deterministic parameter init mimicking nn.Linear's uniform(+/- 1/sqrt(fan_in)).
    bound = 1.0 / (D_in ** 0.5)
    weight = jax.random.uniform(k_w, (D_out, D_in), jnp.float32, -bound, bound)
    bias = jax.random.uniform(k_b, (D_out,), jnp.float32, -bound, bound)
    x = jax.random.normal(k_x, (B, D_in), jnp.float32)

    out = readout_head(x, weight, bias)
    out = jax.block_until_ready(out)

    # Pure-JAX reference (Linear -> softmax over dim=1).
    ref = jax.nn.softmax(x @ weight.T + bias, axis=1)
    assert out.shape == (B, D_out)
    assert jnp.allclose(out, ref, atol=1e-4, rtol=1e-4)
    # Rows sum to ~1 (Newton-refined reciprocal).
    assert jnp.allclose(jnp.sum(out, axis=1), jnp.ones((B,)), atol=1e-4)

    print("KERNEL_OK")
</pallas_src>

<mosaic_0001>
module attributes {stable_mosaic.version = 11 : i64} {
  func.func @readout_kernel(%arg0: i32, %arg1: memref<8x32xf32, #tpu.memory_space<vmem>>, %arg2: memref<32x128xf32, #tpu.memory_space<vmem>>, %arg3: memref<1x128xf32, #tpu.memory_space<vmem>>, %arg4: memref<8x128xf32, #tpu.memory_space<vmem>>) attributes {dimension_semantics = [#tpu.dimension_semantics<parallel>], iteration_bounds = array<i64: 1>, scalar_prefetch = 0 : i64, scratch_operands = 0 : i64, tpu.core_type = #tpu.core_type<tc>, window_params = [{transform_indices = @transform_0, window_bounds = array<i64: 8, 32>}, {pipeline_mode = #tpu.pipeline_mode<synchronous>, transform_indices = @transform_1, window_bounds = array<i64: 32, 128>}, {pipeline_mode = #tpu.pipeline_mode<synchronous>, transform_indices = @transform_2, window_bounds = array<i64: 1, 128>}, {transform_indices = @transform_3, window_bounds = array<i64: 8, 128>}]} {
    %c0 = arith.constant 0 : index
    %c0_0 = arith.constant 0 : index
    %0 = vector.load %arg1[%c0, %c0_0] : memref<8x32xf32, #tpu.memory_space<vmem>>, vector<8x32xf32>
    %c0_1 = arith.constant 0 : index
    %c0_2 = arith.constant 0 : index
    %1 = vector.load %arg2[%c0_1, %c0_2] : memref<32x128xf32, #tpu.memory_space<vmem>>, vector<32x128xf32>
    %cst = arith.constant dense<0.000000e+00> : vector<8x128xf32>
    %2 = tpu.matmul %0, %1, %cst {dimension_numbers = #tpu.dot_dimension_numbers<[1], [0], [0], [1], [0, 0, 1, 1], [], []>} : vector<8x32xf32>, vector<32x128xf32>, vector<8x128xf32> -> vector<8x128xf32>
    %c0_3 = arith.constant 0 : index
    %c0_4 = arith.constant 0 : index
    %3 = vector.load %arg3[%c0_3, %c0_4] : memref<1x128xf32, #tpu.memory_space<vmem>>, vector<1x128xf32>
    %4 = vector.broadcast %3 : vector<1x128xf32> to vector<8x128xf32>
    %5 = arith.addf %2, %4 : vector<8x128xf32>
    %cst_5 = arith.constant dense<0xFF800000> : vector<8xf32>
    %6 = vector.multi_reduction <maximumf>, %5, %cst_5 [1] : vector<8x128xf32> to vector<8xf32>
    %7 = vector.shape_cast %6 : vector<8xf32> to vector<8x1xf32>
    %8 = vector.broadcast %7 : vector<8x1xf32> to vector<8x128xf32>
    %9 = arith.subf %5, %8 : vector<8x128xf32>
    %10 = math.exp %9 : vector<8x128xf32>
    %cst_6 = arith.constant dense<0.000000e+00> : vector<8xf32>
    %11 = vector.multi_reduction <add>, %10, %cst_6 [1] : vector<8x128xf32> to vector<8xf32>
    %12 = vector.shape_cast %11 : vector<8xf32> to vector<8x1xf32>
    %13 = tpu.reciprocal %12 {approx = true} : vector<8x1xf32> -> vector<8x1xf32>
    %14 = arith.mulf %12, %13 : vector<8x1xf32>
    %cst_7 = arith.constant 2.000000e+00 : f32
    %15 = vector.broadcast %cst_7 : f32 to vector<8x1xf32>
    %16 = arith.subf %15, %14 : vector<8x1xf32>
    %17 = arith.mulf %13, %16 : vector<8x1xf32>
    %18 = vector.broadcast %17 : vector<8x1xf32> to vector<8x128xf32>
    %19 = arith.mulf %10, %18 : vector<8x128xf32>
    %c0_8 = arith.constant 0 : index
    %c0_9 = arith.constant 0 : index
    %20 = vector.load %arg4[%c0_8, %c0_9] : memref<8x128xf32, #tpu.memory_space<vmem>>, vector<8x128xf32>
    tpu.vector_store %arg4[%c0_8, %c0_9], %19 {strides = array<i32>} : memref<8x128xf32, #tpu.memory_space<vmem>>, vector<8x128xf32>,
    return
  }
  func.func @transform_0(%arg0: i32) -> (i32, i32) {
    %c0_i32 = arith.constant 0 : i32
    %c0_i32_0 = arith.constant 0 : i32
    return %arg0, %c0_i32 : i32, i32
  }
  func.func @transform_1(%arg0: i32) -> (i32, i32) {
    %c0_i32 = arith.constant 0 : i32
    %c0_i32_0 = arith.constant 0 : i32
    %c0_i32_1 = arith.constant 0 : i32
    return %c0_i32, %c0_i32_0 : i32, i32
  }
  func.func @transform_2(%arg0: i32) -> (i32, i32) {
    %c0_i32 = arith.constant 0 : i32
    %c0_i32_0 = arith.constant 0 : i32
    %c0_i32_1 = arith.constant 0 : i32
    return %c0_i32, %c0_i32_0 : i32, i32
  }
  func.func @transform_3(%arg0: i32) -> (i32, i32) {
    %c0_i32 = arith.constant 0 : i32
    %c0_i32_0 = arith.constant 0 : i32
    return %arg0, %c0_i32 : i32, i32
  }
}

</mosaic_0001>

<llo_original>
// kernel: tpu_custom_call.1
$region0: #{tpu_custom_call.1}
  #allocation0 [shape = 'u32[]', space=smem, size = 0x4, offset = 0x4, fixed_abs, tag = 'smem constant byte address 0x4 - core index']
  #allocation1 [shape = 'u32[144,128]{1,0:T(1,128)}', space=vmem, size = 0x12000, scoped, tag = 'internal scratch']
  %s0 = inlined_call_operand.hbm [shape: f32[8,32], index: 0, kind: input, shape index: {}]
  %s1 = inlined_call_operand.hbm [shape: f32[32,128], index: 1, kind: input, shape index: {}]
  %s2 = inlined_call_operand.vmem [shape: f32[1,128], index: 2, kind: input, shape index: {}]
  %s3 = inlined_call_operand.hbm [shape: f32[8,128], index: 3, kind: output, shape index: {}]
  %s4 = sld [smem:[#allocation0]]
  $region30: #{tpu_custom_call.1} parent=0
    _
  %s6 = ssub.s32 1, %s4
  %s7 = scalar_select 0, %s6, %s4
  $region1: #{tpu_custom_call.1} parent=0
    #allocation2 [shape = 'u8[4096]{0}', space=vmem, size = 0x1000, scoped, tag = 'input window, operand 0, single buffered']
    #allocation3 [shape = 's32[1]{0}', space=sflag, size = 0x4, scoped, tag = 'scoped memory for tpu_custom_call.1']
    #allocation4 [shape = 's32[1]{0}', space=sflag, size = 0x4, scoped, tag = 'scoped memory for tpu_custom_call.1']
    #allocation5 [shape = 'u8[16384]{0}', space=vmem, size = 0x4000, scoped, tag = 'input window, operand 1, single buffered']
    #allocation6 [shape = 's32[1]{0}', space=sflag, size = 0x4, scoped, tag = 'scoped memory for tpu_custom_call.1']
    #allocation7 [shape = 'u8[4096]{0}', space=vmem, size = 0x1000, scoped, tag = 'output window, operand 0, single buffered']
    %8 = vsyncpa [#allocation3], 0
    %9 = vsyncpa [#allocation6], 0
    %10 = vsyncpa [#allocation4], 0
    // Predicated region
    $region2: #{tpu_custom_call.1} parent=1 // pred_check
      _
    $region3: #{tpu_custom_call.1} parent=1 // pred_check_branch
      %12 = sbr.rel (0) target = $region5
    $region4: #{tpu_custom_call.1} parent=1 // pred_region
      %s14 = ssub.s32 128, 128
      %15 = vsyncadd [#allocation3], %s14
      %s17 = sshll.u32 [#allocation2], 4
      %s18 = int_to_ptr.vmem [resolvable:$true] %s17
      %20 = dma.hbm_to_vmem [thread:$0]  %s0, 128, %s18, [#allocation3]
    $region5: #{tpu_custom_call.1} parent=1 // pred_fallthru
      _
    // Predicated region
    $region6: #{tpu_custom_call.1} parent=1 // pred_check
      _
    $region7: #{tpu_custom_call.1} parent=1 // pred_check_branch
      %22 = sbr.rel (0) target = $region9
    $region8: #{tpu_custom_call.1} parent=1 // pred_region
      %s24 = ssub.s32 512, 512
      %25 = vsyncadd [#allocation6], %s24
      %s26 = sshll.u32 [#allocation5], 4
      %s27 = int_to_ptr.vmem [resolvable:$true] %s26
      %32 = dma.hbm_to_vmem [thread:$0]  %s1, 512, %s27, [#allocation6], 128, 128, 8
    $region9: #{tpu_custom_call.1} parent=1 // pred_fallthru
      _
    // Predicated region
    $region10: #{tpu_custom_call.1} parent=1 // pred_check
      _
    $region11: #{tpu_custom_call.1} parent=1 // pred_check_branch
      %34 = sbr.rel (0) target = $region13
    $region12: #{tpu_custom_call.1} parent=1 // pred_region
      _
    $region13: #{tpu_custom_call.1} parent=1 // pred_fallthru
      _
    // Predicated region
    $region14: #{tpu_custom_call.1} parent=1 // pred_check
      _
    $region15: #{tpu_custom_call.1} parent=1 // pred_check_branch
      %36 = sbr.rel (0) target = $region17
    $region16: #{tpu_custom_call.1} parent=1 // pred_region
      %37 = dma.done [#allocation3], 128
    $region17: #{tpu_custom_call.1} parent=1 // pred_fallthru
      _
    // Predicated region
    $region18: #{tpu_custom_call.1} parent=1 // pred_check
      _
    $region19: #{tpu_custom_call.1} parent=1 // pred_check_branch
      %39 = sbr.rel (0) target = $region21
    $region20: #{tpu_custom_call.1} parent=1 // pred_region
      %40 = dma.done [#allocation6], 512
    $region21: #{tpu_custom_call.1} parent=1 // pred_fallthru
      _
    %v41 = vld [vmem:[#allocation2] sm:$0xff]
    %v42 = vld [vmem:[#allocation5] sm:$0xff]
    %v43 = vld [vmem:[#allocation5 + $0x8] sm:$0xff]
    %v44 = vld [vmem:[#allocation5 + $0x10] sm:$0xff]
    %v45 = vld [vmem:[#allocation5 + $0x18] sm:$0xff]
    %v46 = vld [vmem:[%s2] sm:$0x1]
    %v48 = vlaneseq
    %v49 = vshrl.u32 %v48, 7
    %v50 = vsub.s32 0, %v49
    %v51 = vrot.slane %v46, %v50
    %vm53 = vcmask 261120
    %v55 = vsel %vm53, %v41, 0
    %57 = vmatprep.subr.mxu0 0.0
    %58 = vmatpush1.msra.mxu0 0.0
    %59 = vmatprep.subr.mxu0 0.0
    %60 = vmatpush1.msra.mxu0 0.0
    %61 = vmatprep.subr.mxu0 0.0
    %62 = vmatpush1.msra.mxu0 0.0
    %63 = vmatprep.subr.mxu0 0.0
    %64 = vmatpush1.msra.mxu0 0.0
    %65 = vmatprep.subr.mxu0 0.0
    %66 = vmatpush1.msra.mxu0 0.0
    %67 = vmatprep.subr.mxu0 0.0
    %68 = vmatpush1.msra.mxu0 0.0
    %69 = vmatprep.subr.mxu0 0.0
    %70 = vmatpush1.msra.mxu0 0.0
    %71 = vmatprep.subr.mxu0 0.0
    %72 = vmatpush1.msra.mxu0 0.0
    %73 = vmatprep.subr.mxu0 0.0
    %74 = vmatpush1.msra.mxu0 0.0
    %75 = vmatprep.subr.mxu0 0.0
    %76 = vmatpush1.msra.mxu0 0.0
    %77 = vmatprep.subr.mxu0 0.0
    %78 = vmatpush1.msra.mxu0 0.0
    %79 = vmatprep.subr.mxu0 0.0
    %80 = vmatpush1.msra.mxu0 0.0
    %81 = vmatprep.subr.mxu0 0.0
    %82 = vmatpush1.msra.mxu0 %v45
    %83 = vmatprep.subr.mxu0 0.0
    %84 = vmatpush1.msra.mxu0 %v44
    %85 = vmatprep.subr.mxu0 0.0
    %86 = vmatpush1.msra.mxu0 %v43
    %87 = vmatprep.subr.mxu0 0.0
    %88 = vmatpush1.msra.mxu0 %v42
    %89 = vmatprep.subr.mxu0 0.0
    %90 = vmatpush2.msra.mxu0 0.0
    %91 = vmatprep.subr.mxu0 0.0
    %92 = vmatpush2.msra.mxu0 0.0
    %93 = vmatprep.subr.mxu0 0.0
    %94 = vmatpush2.msra.mxu0 0.0
    %95 = vmatprep.subr.mxu0 0.0
    %96 = vmatpush2.msra.mxu0 0.0
    %97 = vmatprep.subr.mxu0 0.0
    %98 = vmatpush2.msra.mxu0 0.0
    %99 = vmatprep.subr.mxu0 0.0
    %100 = vmatpush2.msra.mxu0 0.0
    %101 = vmatprep.subr.mxu0 0.0
    %102 = vmatpush2.msra.mxu0 0.0
    %103 = vmatprep.subr.mxu0 0.0
    %104 = vmatpush2.msra.mxu0 0.0
    %105 = vmatprep.subr.mxu0 0.0
    %106 = vmatpush2.msra.mxu0 0.0
    %107 = vmatprep.subr.mxu0 0.0
    %108 = vmatpush2.msra.mxu0 0.0
    %109 = vmatprep.subr.mxu0 0.0
    %110 = vmatpush2.msra.mxu0 0.0
    %111 = vmatprep.subr.mxu0 0.0
    %112 = vmatpush2.msra.mxu0 0.0
    %113 = vmatprep.subr.mxu0 0.0
    %114 = vmatpush2.msra.mxu0 0.0
    %115 = vmatprep.subr.mxu0 0.0
    %116 = vmatpush2.msra.mxu0 0.0
    %117 = vmatprep.subr.mxu0 0.0
    %118 = vmatpush2.msra.mxu0 0.0
    %119 = vmatprep.subr.mxu0 0.0
    %120 = vmatpush2.msra.mxu0 0.0
    %121 = vmatprep.mubr.f32.mxu0 0.0
    %122 = vmatmul.mubr.f32.gmra.mxu0 %v55
    %v123 = vpop.f32.mrf.mxu0
    %v124 = vadd.f32 %v51, %v123
    %v125 = vpop.f32.mrf.mxu0
    %126 = vdwg.mxu0
    %127 = vmax.xlane.f32.xlu0 %v124
    %v128 = vpop.xlane.xlu0 %127
    %v129 = vsub.f32 %v124, %v128
    %v130 = vmul.f32 %v129, 1.442695
    %v131 = vpow.pop %v130
    %132 = vadd.xlane.f32.xlu0 %v131
    %v133 = vpop.xlane.xlu0 %132
    %v134 = vrcp.pop %v133
    %v135 = vmul.f32 %v133, %v134
    %v136 = vsub.f32 2.0, %v135
    %v137 = vmul.f32 %v134, %v136
    %v138 = vmul.f32 %v131, %v137
    %139 = vst [vmem:[#allocation7] sm:$0xff] %v138
    // Predicated region
    $region22: #{tpu_custom_call.1} parent=1 // pred_check
      _
    $region23: #{tpu_custom_call.1} parent=1 // pred_check_branch
      %141 = sbr.rel (0) target = $region25
    $region24: #{tpu_custom_call.1} parent=1 // pred_region
      %s143 = ssub.s32 128, 128
      %144 = vsyncadd [#allocation4], %s143
      %s146 = sshll.u32 [#allocation7], 4
      %s147 = int_to_ptr.vmem [resolvable:$true] %s146
      %149 = dma.vmem_to_hbm [thread:$0]  %s147, 128, %s3, [#allocation4]
    $region25: #{tpu_custom_call.1} parent=1 // pred_fallthru
      _
    // Predicated region
    $region26: #{tpu_custom_call.1} parent=1 // pred_check
      _
    $region27: #{tpu_custom_call.1} parent=1 // pred_check_branch
      %151 = sbr.rel (0) target = $region29
    $region28: #{tpu_custom_call.1} parent=1 // pred_region
      %152 = dma.done [#allocation4], 128
    $region29: #{tpu_custom_call.1} parent=1 // pred_fallthru
      _
    %153 = vsyncpa [#allocation3], 1
    %154 = vsyncpa [#allocation6], 1
    %155 = vsyncpa [#allocation4], 1

</llo_original>
